<compile_context>
chip_gen: v5e
topology: v5e:2x2
jax: 0.10.0
libtpu: 0.0.40
codegen_flags: <defaults>
</compile_context>

<pallas_src>
import functools

import jax
import jax.numpy as jnp
from jax import lax
from jax.experimental import pallas as pl
from jax.experimental.pallas import tpu as pltpu


def _energy_kernel(packed_ref, out_ref, *, H, W, w_face, w_lb, w_reg, w_bc):
    HW = H * W

    p = packed_ref[...]                           # (8, HW) f32, dense sublanes
    mx, my = p[0:1, :], p[1:2, :]
    sx, sy = p[2:3, :], p[3:4, :]
    tx, ty = p[4:5, :], p[5:6, :]
    mask = p[6:7, :]
    col = p[7:8, :]                               # column j of flat n = i*W + j

    idx = lax.broadcasted_iota(jnp.int32, (1, HW), 1)   # flat index n

    # ---- face energy: w_face * mean over (2,H,W) of mask*(mesh - tgt)^2 -----
    acc = (w_face / (2.0 * HW)) * mask * ((mx - tx) ** 2 + (my - ty) ** 2)

    # ---- line-bending + regularization, one direction at a time -------------
    # pltpu.roll(x, HW - s, axis=1)[n] == x[(n + s) % HW] (jnp.roll semantics,
    # non-negative static shift).  Wrapped / row-crossing lanes are discarded
    # by the jnp.where select below (true select, so inf/NaN from degenerate
    # wrapped "edges" never leaks into the sum — do NOT turn into a multiply).
    def add_direction(acc, shift, valid, n_dir):
        rolled = pltpu.roll(p, HW - shift, axis=1)       # 1 XLU rotate, 8 rows
        diff = rolled - p                                # dense (8,HW) subtract
        sq = diff * diff                                 # dense (8,HW) square
        mdx, mdy = diff[0:1, :], diff[1:2, :]            # mesh diff
        sdx, sdy = diff[2:3, :], diff[3:4, :]            # source-mesh diff
        cross = mdx * sdy - mdy * sdx                    # z of cross(md, sd)
        inv_n2 = pl.reciprocal(sq[2:3, :] + sq[3:4, :], approx=False)
        reg = sq[0:1, :] + sq[1:2, :]
        contrib = ((0.5 * w_lb / n_dir) * cross * cross * inv_n2
                   + (0.5 * w_reg / n_dir) * reg)
        return acc + jnp.where(valid, contrib, 0.0)

    n_u = (H - 1) * W                                    # u: neighbour at n + W
    acc = add_direction(acc, W, idx < n_u, n_u)          # rows 0 .. H-2 valid
    n_v = H * (W - 1)                                    # v: neighbour at n + 1
    acc = add_direction(acc, 1, col < (W - 1), n_v)      # cols 0 .. W-2 valid

    # ---- boundary constraint: masks on full rows (no 1-wide slices) ---------
    is_lr = (col == 0.0) | (col == (W - 1))              # left/right cols (x)
    is_tb = (idx < W) | (idx >= n_u)                     # top/bottom rows (y)
    acc = acc + jnp.where(is_lr, (w_bc / H) * (mx - sx) ** 2, 0.0)
    acc = acc + jnp.where(is_tb, (w_bc / W) * (my - sy) ** 2, 0.0)

    # ---- single fused reduction -> scalar SMEM output ------------------------
    out_ref[0, 0] = jnp.sum(acc)


def energy_forward(mesh, source_mesh, target_mesh, render_mask, opt):
    """Pallas implementation of Energy.forward(). Returns a (1, 1) f32 array."""
    _, H, W = mesh.shape
    HW = H * W

    # Pack everything into one lane-dense AND sublane-dense (8, HW) f32 slab.
    # Row 7 carries the column index so no separate index input is needed.
    col_ids = jnp.tile(jnp.arange(W, dtype=jnp.float32), H).reshape(1, HW)
    packed = jnp.concatenate(
        [mesh.reshape(2, HW).astype(jnp.float32),
         source_mesh.reshape(2, HW).astype(jnp.float32),
         target_mesh.reshape(2, HW).astype(jnp.float32),
         render_mask.reshape(1, HW).astype(jnp.float32),
         col_ids],
        axis=0)                                          # (8, HW)

    kernel = functools.partial(
        _energy_kernel, H=H, W=W,
        w_face=float(opt["face_energy"]),
        w_lb=float(opt["line_bending"]),
        w_reg=float(opt["regularization"]),
        w_bc=float(opt["boundary_constraint"]),
    )

    # Gridless whole-slab design needs a few copies of the packed slab live in
    # VMEM (input + roll/diff temporaries); scale the scoped limit with the
    # problem so large meshes keep working on v5e/v6e (128 MiB physical).
    # TODO(synk): for very large meshes (HW >~ 1M) and especially on v7x
    # (64 MiB physical VMEM), tile along H with a 1-row halo and accumulate the
    # scalar across an "arbitrary" grid axis (pl.when init/finalize) instead;
    # for batches of meshes add a leading "parallel" grid axis for v7x's 2 TCs.
    packed_bytes = 8 * HW * 4
    vmem_limit = int(min(100 * 1024 * 1024,
                         max(32 * 1024 * 1024, 16 * packed_bytes)))

    return pl.pallas_call(
        kernel,
        out_shape=jax.ShapeDtypeStruct((1, 1), jnp.float32),
        in_specs=[pl.BlockSpec(memory_space=pltpu.MemorySpace.VMEM)],
        out_specs=pl.BlockSpec(memory_space=pltpu.MemorySpace.SMEM),
        compiler_params=pltpu.CompilerParams(vmem_limit_bytes=vmem_limit),
    )(packed)


def energy_ref(mesh, src, tgt, mask, opt):
    """Pure-JAX reference mirroring the PyTorch forward."""
    H, W = mesh.shape[1], mesh.shape[2]
    face = jnp.mean(mask[None] * (mesh - tgt) ** 2)

    md_u = mesh[:, 1:, :] - mesh[:, :-1, :]
    sd_u = src[:, 1:, :] - src[:, :-1, :]
    usd_u = sd_u / jnp.linalg.norm(sd_u, axis=0, keepdims=True)
    cross_u = md_u[0] * usd_u[1] - md_u[1] * usd_u[0]
    lb_u = jnp.mean(cross_u ** 2)
    reg_u = jnp.mean(jnp.sum(md_u ** 2, axis=0))

    md_v = mesh[:, :, 1:] - mesh[:, :, :-1]
    sd_v = src[:, :, 1:] - src[:, :, :-1]
    usd_v = sd_v / jnp.linalg.norm(sd_v, axis=0, keepdims=True)
    cross_v = md_v[0] * usd_v[1] - md_v[1] * usd_v[0]
    lb_v = jnp.mean(cross_v ** 2)
    reg_v = jnp.mean(jnp.sum(md_v ** 2, axis=0))

    lb = (lb_u + lb_v) / 2
    reg = (reg_u + reg_v) / 2

    bc = (jnp.mean((mesh[0, :, 0] - src[0, :, 0]) ** 2)
          + jnp.mean((mesh[0, :, W - 1] - src[0, :, W - 1]) ** 2)
          + jnp.mean((mesh[1, 0, :] - src[1, 0, :]) ** 2)
          + jnp.mean((mesh[1, H - 1, :] - src[1, H - 1, :]) ** 2))

    return (opt["face_energy"] * face + opt["line_bending"] * lb
            + opt["regularization"] * reg + opt["boundary_constraint"] * bc)


if __name__ == "__main__":
    H, W = 16, 16
    key = jax.random.PRNGKey(0)
    k1, k2, k3 = jax.random.split(key, 3)

    # Regular source grid (channel 0 = x coordinate, channel 1 = y coordinate).
    ys, xs = jnp.meshgrid(jnp.arange(H, dtype=jnp.float32),
                          jnp.arange(W, dtype=jnp.float32), indexing="ij")
    source_mesh = jnp.stack([xs, ys], axis=0)                       # (2, H, W)
    target_mesh = source_mesh + 0.1 * jax.random.normal(k1, (2, H, W), jnp.float32)
    mesh = source_mesh + 0.05 * jax.random.normal(k2, (2, H, W), jnp.float32)
    render_mask = (jax.random.uniform(k3, (H, W)) > 0.3).astype(jnp.float32)
    correction_strength = jnp.ones((H, W), jnp.float32)  # shapes-only in torch code

    opt = {"face_energy": 1.0, "line_bending": 10.0,
           "regularization": 0.1, "boundary_constraint": 5.0}

    out = energy_forward(mesh, source_mesh, target_mesh, render_mask, opt)
    out = jax.block_until_ready(out)

    ref = energy_ref(mesh, source_mesh, target_mesh, render_mask, opt)
    assert jnp.allclose(out[0, 0], ref, rtol=1e-4, atol=1e-5), (out, ref)

    print("KERNEL_OK")
</pallas_src>

<mosaic_0001>
module attributes {stable_mosaic.version = 11 : i64} {
  func.func @_energy_kernel(%arg0: memref<8x256xf32, #tpu.memory_space<vmem>>, %arg1: memref<1x1xf32, #tpu.memory_space<smem>>) attributes {dimension_semantics = [], scalar_prefetch = 0 : i64, scratch_operands = 0 : i64, tpu.core_type = #tpu.core_type<tc>} {
    %c0 = arith.constant 0 : index
    %c0_0 = arith.constant 0 : index
    %0 = vector.load %arg0[%c0, %c0_0] : memref<8x256xf32, #tpu.memory_space<vmem>>, vector<8x256xf32>
    %1 = vector.extract_strided_slice %0 {offsets = [0, 0], sizes = [1, 256], strides = [1, 1]} : vector<8x256xf32> to vector<1x256xf32>
    %2 = vector.extract_strided_slice %0 {offsets = [1, 0], sizes = [1, 256], strides = [1, 1]} : vector<8x256xf32> to vector<1x256xf32>
    %3 = vector.extract_strided_slice %0 {offsets = [2, 0], sizes = [1, 256], strides = [1, 1]} : vector<8x256xf32> to vector<1x256xf32>
    %4 = vector.extract_strided_slice %0 {offsets = [3, 0], sizes = [1, 256], strides = [1, 1]} : vector<8x256xf32> to vector<1x256xf32>
    %5 = vector.extract_strided_slice %0 {offsets = [4, 0], sizes = [1, 256], strides = [1, 1]} : vector<8x256xf32> to vector<1x256xf32>
    %6 = vector.extract_strided_slice %0 {offsets = [5, 0], sizes = [1, 256], strides = [1, 1]} : vector<8x256xf32> to vector<1x256xf32>
    %7 = vector.extract_strided_slice %0 {offsets = [6, 0], sizes = [1, 256], strides = [1, 1]} : vector<8x256xf32> to vector<1x256xf32>
    %8 = vector.extract_strided_slice %0 {offsets = [7, 0], sizes = [1, 256], strides = [1, 1]} : vector<8x256xf32> to vector<1x256xf32>
    %9 = tpu.iota {dimensions = array<i32: 1>} : vector<1x256xi32>
    %cst = arith.constant 0.001953125 : f32
    %10 = vector.broadcast %cst : f32 to vector<1x256xf32>
    %11 = arith.mulf %10, %7 : vector<1x256xf32>
    %12 = arith.subf %1, %5 : vector<1x256xf32>
    %13 = arith.mulf %12, %12 : vector<1x256xf32>
    %14 = arith.subf %2, %6 : vector<1x256xf32>
    %15 = arith.mulf %14, %14 : vector<1x256xf32>
    %16 = arith.addf %13, %15 : vector<1x256xf32>
    %17 = arith.mulf %11, %16 : vector<1x256xf32>
    %c240_i32 = arith.constant 240 : i32
    %18 = vector.broadcast %c240_i32 : i32 to vector<1x256xi32>
    %19 = arith.cmpi slt, %9, %18 : vector<1x256xi32>
    %c240_i32_1 = arith.constant 240 : i32
    %20 = tpu.dynamic_rotate %0 by %c240_i32_1 dim 1 : vector<8x256xf32>, i32 -> vector<8x256xf32>
    %21 = arith.subf %20, %0 : vector<8x256xf32>
    %22 = arith.mulf %21, %21 : vector<8x256xf32>
    %23 = vector.extract_strided_slice %21 {offsets = [0, 0], sizes = [1, 256], strides = [1, 1]} : vector<8x256xf32> to vector<1x256xf32>
    %24 = vector.extract_strided_slice %21 {offsets = [1, 0], sizes = [1, 256], strides = [1, 1]} : vector<8x256xf32> to vector<1x256xf32>
    %25 = vector.extract_strided_slice %21 {offsets = [2, 0], sizes = [1, 256], strides = [1, 1]} : vector<8x256xf32> to vector<1x256xf32>
    %26 = vector.extract_strided_slice %21 {offsets = [3, 0], sizes = [1, 256], strides = [1, 1]} : vector<8x256xf32> to vector<1x256xf32>
    %27 = arith.mulf %23, %26 : vector<1x256xf32>
    %28 = arith.mulf %24, %25 : vector<1x256xf32>
    %29 = arith.subf %27, %28 : vector<1x256xf32>
    %30 = vector.extract_strided_slice %22 {offsets = [2, 0], sizes = [1, 256], strides = [1, 1]} : vector<8x256xf32> to vector<1x256xf32>
    %31 = vector.extract_strided_slice %22 {offsets = [3, 0], sizes = [1, 256], strides = [1, 1]} : vector<8x256xf32> to vector<1x256xf32>
    %32 = arith.addf %30, %31 : vector<1x256xf32>
    %33 = tpu.reciprocal %32 : vector<1x256xf32> -> vector<1x256xf32>
    %34 = vector.extract_strided_slice %22 {offsets = [0, 0], sizes = [1, 256], strides = [1, 1]} : vector<8x256xf32> to vector<1x256xf32>
    %35 = vector.extract_strided_slice %22 {offsets = [1, 0], sizes = [1, 256], strides = [1, 1]} : vector<8x256xf32> to vector<1x256xf32>
    %36 = arith.addf %34, %35 : vector<1x256xf32>
    %cst_2 = arith.constant 0.020833334 : f32
    %37 = vector.broadcast %cst_2 : f32 to vector<1x256xf32>
    %38 = arith.mulf %37, %29 : vector<1x256xf32>
    %39 = arith.mulf %38, %29 : vector<1x256xf32>
    %40 = arith.mulf %39, %33 : vector<1x256xf32>
    %cst_3 = arith.constant 2.08333338E-4 : f32
    %41 = vector.broadcast %cst_3 : f32 to vector<1x256xf32>
    %42 = arith.mulf %41, %36 : vector<1x256xf32>
    %43 = arith.addf %40, %42 : vector<1x256xf32>
    %cst_4 = arith.constant 0.000000e+00 : f32
    %44 = vector.broadcast %cst_4 : f32 to vector<1x256xf32>
    %45 = arith.select %19, %43, %44 : vector<1x256xi1>, vector<1x256xf32>
    %46 = arith.addf %17, %45 : vector<1x256xf32>
    %cst_5 = arith.constant 1.500000e+01 : f32
    %47 = vector.broadcast %cst_5 : f32 to vector<1x256xf32>
    %48 = arith.cmpf olt, %8, %47 : vector<1x256xf32>
    %c255_i32 = arith.constant 255 : i32
    %49 = tpu.dynamic_rotate %0 by %c255_i32 dim 1 : vector<8x256xf32>, i32 -> vector<8x256xf32>
    %50 = arith.subf %49, %0 : vector<8x256xf32>
    %51 = arith.mulf %50, %50 : vector<8x256xf32>
    %52 = vector.extract_strided_slice %50 {offsets = [0, 0], sizes = [1, 256], strides = [1, 1]} : vector<8x256xf32> to vector<1x256xf32>
    %53 = vector.extract_strided_slice %50 {offsets = [1, 0], sizes = [1, 256], strides = [1, 1]} : vector<8x256xf32> to vector<1x256xf32>
    %54 = vector.extract_strided_slice %50 {offsets = [2, 0], sizes = [1, 256], strides = [1, 1]} : vector<8x256xf32> to vector<1x256xf32>
    %55 = vector.extract_strided_slice %50 {offsets = [3, 0], sizes = [1, 256], strides = [1, 1]} : vector<8x256xf32> to vector<1x256xf32>
    %56 = arith.mulf %52, %55 : vector<1x256xf32>
    %57 = arith.mulf %53, %54 : vector<1x256xf32>
    %58 = arith.subf %56, %57 : vector<1x256xf32>
    %59 = vector.extract_strided_slice %51 {offsets = [2, 0], sizes = [1, 256], strides = [1, 1]} : vector<8x256xf32> to vector<1x256xf32>
    %60 = vector.extract_strided_slice %51 {offsets = [3, 0], sizes = [1, 256], strides = [1, 1]} : vector<8x256xf32> to vector<1x256xf32>
    %61 = arith.addf %59, %60 : vector<1x256xf32>
    %62 = tpu.reciprocal %61 : vector<1x256xf32> -> vector<1x256xf32>
    %63 = vector.extract_strided_slice %51 {offsets = [0, 0], sizes = [1, 256], strides = [1, 1]} : vector<8x256xf32> to vector<1x256xf32>
    %64 = vector.extract_strided_slice %51 {offsets = [1, 0], sizes = [1, 256], strides = [1, 1]} : vector<8x256xf32> to vector<1x256xf32>
    %65 = arith.addf %63, %64 : vector<1x256xf32>
    %cst_6 = arith.constant 0.020833334 : f32
    %66 = vector.broadcast %cst_6 : f32 to vector<1x256xf32>
    %67 = arith.mulf %66, %58 : vector<1x256xf32>
    %68 = arith.mulf %67, %58 : vector<1x256xf32>
    %69 = arith.mulf %68, %62 : vector<1x256xf32>
    %cst_7 = arith.constant 2.08333338E-4 : f32
    %70 = vector.broadcast %cst_7 : f32 to vector<1x256xf32>
    %71 = arith.mulf %70, %65 : vector<1x256xf32>
    %72 = arith.addf %69, %71 : vector<1x256xf32>
    %cst_8 = arith.constant 0.000000e+00 : f32
    %73 = vector.broadcast %cst_8 : f32 to vector<1x256xf32>
    %74 = arith.select %48, %72, %73 : vector<1x256xi1>, vector<1x256xf32>
    %75 = arith.addf %46, %74 : vector<1x256xf32>
    %cst_9 = arith.constant 0.000000e+00 : f32
    %76 = vector.broadcast %cst_9 : f32 to vector<1x256xf32>
    %77 = arith.cmpf oeq, %8, %76 : vector<1x256xf32>
    %cst_10 = arith.constant 1.500000e+01 : f32
    %78 = vector.broadcast %cst_10 : f32 to vector<1x256xf32>
    %79 = arith.cmpf oeq, %8, %78 : vector<1x256xf32>
    %80 = arith.ori %77, %79 : vector<1x256xi1>
    %c16_i32 = arith.constant 16 : i32
    %81 = vector.broadcast %c16_i32 : i32 to vector<1x256xi32>
    %82 = arith.cmpi slt, %9, %81 : vector<1x256xi32>
    %c240_i32_11 = arith.constant 240 : i32
    %83 = vector.broadcast %c240_i32_11 : i32 to vector<1x256xi32>
    %84 = arith.cmpi sge, %9, %83 : vector<1x256xi32>
    %85 = arith.ori %82, %84 : vector<1x256xi1>
    %86 = arith.subf %1, %3 : vector<1x256xf32>
    %87 = arith.mulf %86, %86 : vector<1x256xf32>
    %cst_12 = arith.constant 3.125000e-01 : f32
    %88 = vector.broadcast %cst_12 : f32 to vector<1x256xf32>
    %89 = arith.mulf %88, %87 : vector<1x256xf32>
    %cst_13 = arith.constant 0.000000e+00 : f32
    %90 = vector.broadcast %cst_13 : f32 to vector<1x256xf32>
    %91 = arith.select %80, %89, %90 : vector<1x256xi1>, vector<1x256xf32>
    %92 = arith.addf %75, %91 : vector<1x256xf32>
    %93 = arith.subf %2, %4 : vector<1x256xf32>
    %94 = arith.mulf %93, %93 : vector<1x256xf32>
    %cst_14 = arith.constant 3.125000e-01 : f32
    %95 = vector.broadcast %cst_14 : f32 to vector<1x256xf32>
    %96 = arith.mulf %95, %94 : vector<1x256xf32>
    %cst_15 = arith.constant 0.000000e+00 : f32
    %97 = vector.broadcast %cst_15 : f32 to vector<1x256xf32>
    %98 = arith.select %85, %96, %97 : vector<1x256xi1>, vector<1x256xf32>
    %99 = arith.addf %92, %98 : vector<1x256xf32>
    %100 = vector.shape_cast %99 : vector<1x256xf32> to vector<1x1x256xf32>
    %cst_16 = arith.constant dense<0.000000e+00> : vector<1xf32>
    %101 = vector.multi_reduction <add>, %100, %cst_16 [1, 2] : vector<1x1x256xf32> to vector<1xf32>
    %102 = vector.shape_cast %101 : vector<1xf32> to vector<1x1x1xf32>
    %103 = vector.extract %102[0, 0, 0] : f32 from vector<1x1x1xf32>
    %c0_17 = arith.constant 0 : index
    %c0_18 = arith.constant 0 : index
    %104 = memref.load %arg1[%c0_17, %c0_18] : memref<1x1xf32, #tpu.memory_space<smem>>
    memref.store %103, %arg1[%c0_17, %c0_18] : memref<1x1xf32, #tpu.memory_space<smem>>
    return
  }
}

</mosaic_0001>

<llo_original>
// kernel: tpu_custom_call.1
$region0: #{tpu_custom_call.1}
  #allocation0 [shape = 'u32[]', space=smem, size = 0x4, offset = 0x4, fixed_abs, tag = 'smem constant byte address 0x4 - core index']
  #allocation1 [shape = 'u32[72,128]{1,0:T(1,128)}', space=vmem, size = 0x9000, scoped, tag = 'internal scratch']
  %s0 = inlined_call_operand.hbm [shape: f32[8,256], index: 0, kind: input, shape index: {}]
  %s1 = inlined_call_operand.hbm [shape: f32[1,1], index: 1, kind: output, shape index: {}]
  %s2 = sld [smem:[#allocation0]]
  $region18: #{tpu_custom_call.1} parent=0
    _
  %s4 = ssub.s32 1, %s2
  %s5 = scalar_select 0, %s4, %s2
  $region1: #{tpu_custom_call.1} parent=0
    #allocation2 [shape = 'u8[8192]{0}', space=vmem, size = 0x2000, scoped, tag = 'input window, operand 0, single buffered']
    #allocation3 [shape = 's32[1]{0}', space=sflag, size = 0x4, scoped, tag = 'scoped memory for tpu_custom_call.1']
    #allocation4 [shape = 's32[1]{0}', space=sflag, size = 0x4, scoped, tag = 'scoped memory for tpu_custom_call.1']
    #allocation5 [shape = 'u8[512]{0}', space=smem, size = 0x200, scoped, tag = 'output window, operand 0, single buffered']
    %6 = vsyncpa [#allocation3], 0
    %7 = vsyncpa [#allocation4], 0
    // Predicated region
    $region2: #{tpu_custom_call.1} parent=1 // pred_check
      _
    $region3: #{tpu_custom_call.1} parent=1 // pred_check_branch
      %9 = sbr.rel (0) target = $region5
    $region4: #{tpu_custom_call.1} parent=1 // pred_region
      %11 = vsyncadd [#allocation3], 0
      %s13 = sshll.u32 %s0, 4
      %s14 = int_to_ptr.hbm [resolvable:$true] %s13
      %s15 = sshll.u32 [#allocation2], 4
      %s16 = int_to_ptr.vmem [resolvable:$true] %s15
      %18 = dma.hbm_to_vmem [thread:$0]  %s14, 256, %s16, [#allocation3]
    $region5: #{tpu_custom_call.1} parent=1 // pred_fallthru
      _
    // Predicated region
    $region6: #{tpu_custom_call.1} parent=1 // pred_check
      _
    $region7: #{tpu_custom_call.1} parent=1 // pred_check_branch
      %20 = sbr.rel (0) target = $region9
    $region8: #{tpu_custom_call.1} parent=1 // pred_region
      %22 = dma.done [#allocation3], 256
    $region9: #{tpu_custom_call.1} parent=1 // pred_fallthru
      _
    %v23 = vld [vmem:[#allocation2] sm:$0xff]
    %v24 = vld [vmem:[#allocation2 + $0x8] sm:$0xff]
    %v25 = vlaneseq
    %v26 = vand.u32 %v25, 127
    %v27 = vadd.s32 %v26, 128
    %v28 = vmul.f32 %v23, 0.001953125
    %v29 = vmul.f32 %v24, 0.001953125
    %v32 = vrot.slane %v23, 4
    %v33 = vrot.slane %v24, 4
    %v36 = vsub.f32 %v23, %v32
    %v37 = vsub.f32 %v24, %v33
    %v38 = vmul.f32 %v36, %v36
    %v39 = vmul.f32 %v37, %v37
    %v42 = vrot.slane %v38, 1
    %v43 = vrot.slane %v39, 1
    %v46 = vadd.f32 %v38, %v42
    %v47 = vadd.f32 %v39, %v43
    %v50 = vrot.slane %v46, 2
    %v51 = vrot.slane %v47, 2
    %v54 = vmul.f32 %v28, %v50
    %v55 = vmul.f32 %v29, %v51
    %vm56 = vcmp.lt.s32.totalorder %v26, 240
    %vm57 = vcmp.lt.s32.totalorder %v27, 240
    %58 = vrot.lane.b32.xlu0 %v23, 112
    %v59 = vpop.permute.xlu0 %58
    %60 = vrot.lane.b32.xlu0 %v24, 112
    %v61 = vpop.permute.xlu0 %60
    %vm62 = vcmp.lt.s32.totalorder %v26, 112
    %v63 = vsel %vm62, %v59, %v61
    %v64 = vsel %vm62, %v61, %v59
    %v65 = vsub.f32 %v63, %v23
    %v66 = vsub.f32 %v64, %v24
    %v67 = vmul.f32 %v65, %v65
    %v68 = vmul.f32 %v66, %v66
    %v71 = vrot.slane %v65, 3
    %v72 = vrot.slane %v66, 3
    %v75 = vmul.f32 %v65, %v71
    %v76 = vmul.f32 %v66, %v72
    %v77 = vrot.slane %v65, 1
    %v78 = vrot.slane %v66, 1
    %v81 = vmul.f32 %v65, %v77
    %v82 = vmul.f32 %v66, %v78
    %v85 = vrot.slane %v81, 1
    %v86 = vrot.slane %v82, 1
    %v89 = vsub.f32 %v75, %v85
    %v90 = vsub.f32 %v76, %v86
    %v93 = vrot.slane %v67, 1
    %v94 = vrot.slane %v68, 1
    %v97 = vadd.f32 %v67, %v93
    %v98 = vadd.f32 %v68, %v94
    %v99 = vrcp.pop %v97
    %v100 = vmul.f32 %v97, %v99
    %v101 = vsub.f32 1.0, %v100
    %v102 = vmul.f32 %v99, %v101
    %v103 = vadd.f32 %v99, %v102
    %vm104 = vweird.f32 %v97
    %vm105 = vweird.f32 %v99
    %vm106 = vmor %vm104, %vm105
    %v107 = vsel %vm106, %v99, %v103
    %v108 = vand.u32 2147483647, %v97
    %vm109 = vcmp.eq.f32.partialorder %v108, 8.507059e+37
    %v110 = vand.u32 %v97, 2147483648
    %v111 = vor.u32 1.1754944e-38, %v110
    %v112 = vsel %vm109, %v111, %v107
    %v113 = vrcp.pop %v98
    %v114 = vmul.f32 %v98, %v113
    %v115 = vsub.f32 1.0, %v114
    %v116 = vmul.f32 %v113, %v115
    %v117 = vadd.f32 %v113, %v116
    %vm118 = vweird.f32 %v98
    %vm119 = vweird.f32 %v113
    %vm120 = vmor %vm118, %vm119
    %v121 = vsel %vm120, %v113, %v117
    %v122 = vand.u32 2147483647, %v98
    %vm123 = vcmp.eq.f32.partialorder %v122, 8.507059e+37
    %v124 = vand.u32 %v98, 2147483648
    %v125 = vor.u32 1.1754944e-38, %v124
    %v126 = vsel %vm123, %v125, %v121
    %v127 = vmul.f32 %v89, 0.020833334
    %v128 = vmul.f32 %v90, 0.020833334
    %v129 = vmul.f32 %v127, %v89
    %v130 = vmul.f32 %v128, %v90
    %v133 = vrot.slane %v112, 2
    %v134 = vrot.slane %v126, 2
    %v137 = vmul.f32 %v129, %v133
    %v138 = vmul.f32 %v130, %v134
    %v139 = vmul.f32 %v97, 0.00020833334
    %v140 = vmul.f32 %v98, 0.00020833334
    %v141 = vadd.f32 %v137, %v139
    %v142 = vadd.f32 %v138, %v140
    %v143 = vsel %vm56, %v141, 0.0
    %v144 = vsel %vm57, %v142, 0.0
    %v147 = vrot.slane %v143, 2
    %v148 = vrot.slane %v144, 2
    %v151 = vadd.f32 %v54, %v147
    %v152 = vadd.f32 %v55, %v148
    %vm153 = vcmp.lt.f32.partialorder %v23, 15.0
    %vm154 = vcmp.lt.f32.partialorder %v24, 15.0
    %155 = vrot.lane.b32.xlu0 %v23, 127
    %v156 = vpop.permute.xlu0 %155
    %157 = vrot.lane.b32.xlu0 %v24, 127
    %v158 = vpop.permute.xlu0 %157
    %vm159 = vcmp.lt.s32.totalorder %v26, 127
    %v160 = vsel %vm159, %v156, %v158
    %v161 = vsel %vm159, %v158, %v156
    %v162 = vsub.f32 %v160, %v23
    %v163 = vsub.f32 %v161, %v24
    %v164 = vmul.f32 %v162, %v162
    %v165 = vmul.f32 %v163, %v163
    %v168 = vrot.slane %v162, 3
    %v169 = vrot.slane %v163, 3
    %v172 = vmul.f32 %v162, %v168
    %v173 = vmul.f32 %v163, %v169
    %v174 = vrot.slane %v162, 1
    %v175 = vrot.slane %v163, 1
    %v178 = vmul.f32 %v162, %v174
    %v179 = vmul.f32 %v163, %v175
    %v182 = vrot.slane %v178, 1
    %v183 = vrot.slane %v179, 1
    %v186 = vsub.f32 %v172, %v182
    %v187 = vsub.f32 %v173, %v183
    %v190 = vrot.slane %v164, 1
    %v191 = vrot.slane %v165, 1
    %v194 = vadd.f32 %v164, %v190
    %v195 = vadd.f32 %v165, %v191
    %v196 = vrcp.pop %v194
    %v197 = vmul.f32 %v194, %v196
    %v198 = vsub.f32 1.0, %v197
    %v199 = vmul.f32 %v196, %v198
    %v200 = vadd.f32 %v196, %v199
    %vm201 = vweird.f32 %v194
    %vm202 = vweird.f32 %v196
    %vm203 = vmor %vm201, %vm202
    %v204 = vsel %vm203, %v196, %v200
    %v205 = vand.u32 2147483647, %v194
    %vm206 = vcmp.eq.f32.partialorder %v205, 8.507059e+37
    %v207 = vand.u32 %v194, 2147483648
    %v208 = vor.u32 1.1754944e-38, %v207
    %v209 = vsel %vm206, %v208, %v204
    %v210 = vrcp.pop %v195
    %v211 = vmul.f32 %v195, %v210
    %v212 = vsub.f32 1.0, %v211
    %v213 = vmul.f32 %v210, %v212
    %v214 = vadd.f32 %v210, %v213
    %vm215 = vweird.f32 %v195
    %vm216 = vweird.f32 %v210
    %vm217 = vmor %vm215, %vm216
    %v218 = vsel %vm217, %v210, %v214
    %v219 = vand.u32 2147483647, %v195
    %vm220 = vcmp.eq.f32.partialorder %v219, 8.507059e+37
    %v221 = vand.u32 %v195, 2147483648
    %v222 = vor.u32 1.1754944e-38, %v221
    %v223 = vsel %vm220, %v222, %v218
    %v224 = vmul.f32 %v186, 0.020833334
    %v225 = vmul.f32 %v187, 0.020833334
    %v226 = vmul.f32 %v224, %v186
    %v227 = vmul.f32 %v225, %v187
    %v230 = vrot.slane %v209, 2
    %v231 = vrot.slane %v223, 2
    %v234 = vmul.f32 %v226, %v230
    %v235 = vmul.f32 %v227, %v231
    %v236 = vmul.f32 %v194, 0.00020833334
    %v237 = vmul.f32 %v195, 0.00020833334
    %v238 = vadd.f32 %v234, %v236
    %v239 = vadd.f32 %v235, %v237
    %v242 = vrot.slane %v238, 1
    %v243 = vrot.slane %v239, 1
    %v246 = vsel %vm153, %v242, 0.0
    %v247 = vsel %vm154, %v243, 0.0
    %v250 = vrot.slane %v246, 1
    %v251 = vrot.slane %v247, 1
    %v254 = vadd.f32 %v151, %v250
    %v255 = vadd.f32 %v152, %v251
    %vm256 = vcmp.eq.f32.partialorder %v23, 0.0
    %vm257 = vcmp.eq.f32.partialorder %v24, 0.0
    %vm258 = vcmp.eq.f32.partialorder %v23, 15.0
    %vm259 = vcmp.eq.f32.partialorder %v24, 15.0
    %vm260 = vmor %vm256, %vm258
    %vm261 = vmor %vm257, %vm259
    %vm262 = vcmp.lt.s32.totalorder %v26, 16
    %vm263 = vcmp.lt.s32.totalorder %v27, 16
    %vm264 = vcmp.ge.s32.totalorder %v26, 240
    %vm265 = vcmp.ge.s32.totalorder %v27, 240
    %vm266 = vmor %vm262, %vm264
    %vm267 = vmor %vm263, %vm265
    %v268 = vrot.slane %v23, 2
    %v269 = vrot.slane %v24, 2
    %v272 = vsub.f32 %v23, %v268
    %v273 = vsub.f32 %v24, %v269
    %v274 = vmul.f32 %v272, %v272
    %v275 = vmul.f32 %v273, %v273
    %v276 = vmul.f32 %v274, 0.3125
    %v277 = vmul.f32 %v275, 0.3125
    %v280 = vrot.slane %v276, 1
    %v281 = vrot.slane %v277, 1
    %v284 = vsel %vm260, %v280, 0.0
    %v285 = vsel %vm261, %v281, 0.0
    %v288 = vrot.slane %v284, 1
    %v289 = vrot.slane %v285, 1
    %v292 = vadd.f32 %v254, %v288
    %v293 = vadd.f32 %v255, %v289
    %v294 = vsel %vm266, %v276, 0.0
    %v295 = vsel %vm267, %v277, 0.0
    %v298 = vrot.slane %v294, 3
    %v299 = vrot.slane %v295, 3
    %v302 = vadd.f32 %v292, %v298
    %v303 = vadd.f32 %v293, %v299
    %v306 = vrot.slane %v302, 6
    %v307 = vrot.slane %v303, 6
    %vm310 = vcmask 1040384
    %v311 = vsel %vm310, %v306, 0.0
    %v312 = vsel %vm310, %v307, 0.0
    %v313 = vadd.f32 %v311, %v312
    %314 = vadd.xlane.f32.xlu0 %v313
    %v315 = vpop.xlane.xlu0 %314
    %v316 = vrot.slane %v315, 4
    %v317 = vadd.f32 %v315, %v316
    %v318 = vrot.slane %v317, 2
    %v319 = vadd.f32 %v317, %v318
    %v320 = vrot.slane %v319, 1
    %v321 = vadd.f32 %v319, %v320
    %s322 = vtos %v321
    %s323 = scalar_lea.smem [#allocation5], 0
    %324 = sst [smem:[%s323]] %s322
    // Predicated region
    $region10: #{tpu_custom_call.1} parent=1 // pred_check
      _
    $region11: #{tpu_custom_call.1} parent=1 // pred_check_branch
      %326 = sbr.rel (0) target = $region13
    $region12: #{tpu_custom_call.1} parent=1 // pred_region
      %328 = vsyncadd [#allocation4], 0
      %s330 = sshll.u32 %s1, 4
      %s331 = int_to_ptr.hbm [resolvable:$true] %s330
      %333 = dma.smem_to_hbm [#allocation5], 16, %s331, [#allocation4]
    $region13: #{tpu_custom_call.1} parent=1 // pred_fallthru
      _
    // Predicated region
    $region14: #{tpu_custom_call.1} parent=1 // pred_check
      _
    $region15: #{tpu_custom_call.1} parent=1 // pred_check_branch
      %335 = sbr.rel (0) target = $region17
    $region16: #{tpu_custom_call.1} parent=1 // pred_region
      %337 = dma.done [#allocation4], 16
    $region17: #{tpu_custom_call.1} parent=1 // pred_fallthru
      _
    %338 = sfence
    %339 = vsyncpa [#allocation3], 1
    %340 = vsyncpa [#allocation4], 1

</llo_original>
